<compile_context>
chip_gen: v5e
topology: v5e:2x2
jax: 0.10.0
libtpu: 0.0.40
codegen_flags: <defaults>
</compile_context>

<pallas_src>
import functools

import jax
import jax.numpy as jnp
from jax import lax
from jax.experimental import pallas as pl
from jax.experimental.pallas import tpu as pltpu


def _mim_kernel(feat_ref, w1_ref, b1_ref, w2_ref, b2_ref, out_ref, *, batch: int):
    # feat_ref: (2B, D) — image rows stacked on top of text rows.
    x = feat_ref[...]                                # incoming dtype (f32 or bf16)
    w1 = w1_ref[...]                                 # (D, D), same dtype as x
    w2 = w2_ref[...]                                 # (D, D), 1/sqrt(t) pre-folded
    b1 = b1_ref[...].astype(jnp.float32)             # (1, D)
    b2 = b2_ref[...].astype(jnp.float32)             # (1, D), 1/sqrt(t) pre-folded

    # Shared projection, single pass over the stacked batch: Linear -> ReLU -> Linear.
    h = jnp.maximum(jnp.dot(x, w1, preferred_element_type=jnp.float32) + b1, 0.0)
    h = h.astype(w2.dtype)                           # keep MXU at native input rate
    f = jnp.dot(h, w2, preferred_element_type=jnp.float32) + b2   # (2B, D) f32
    # 1/temperature is already baked into (w2, b2) by the wrapper.

    f_i = f[:batch, :]                               # (B, D)
    f_t = f[batch:, :]                               # (B, D)

    # sim = f_i @ f_t^T without materializing a transpose (contract dim 1 of both).
    sim = lax.dot_general(f_i, f_t, (((1,), (1,)), ((), ())),
                          preferred_element_type=jnp.float32)     # (B, B)

    B = batch
    row_ids = lax.broadcasted_iota(jnp.int32, (B, B), 0)
    col_ids = lax.broadcasted_iota(jnp.int32, (B, B), 1)
    diag_mask = row_ids == col_ids

    # Row-direction LSE (softmax over lanes).
    row_max = jnp.max(sim, axis=-1, keepdims=True)                       # (B, 1)
    lse_rows = jnp.log(jnp.sum(jnp.exp(sim - row_max), axis=-1,
                               keepdims=True)) + row_max                 # (B, 1)
    # Column-direction LSE (softmax over sublanes) == row LSE of sim.T.
    col_max = jnp.max(sim, axis=0, keepdims=True)                        # (1, B)
    lse_cols = jnp.log(jnp.sum(jnp.exp(sim - col_max), axis=0,
                               keepdims=True)) + col_max                 # (1, B)

    # Target term diag(sim) is shared by both CE directions — compute once.
    diag_rows = jnp.sum(jnp.where(diag_mask, sim, 0.0), axis=-1,
                        keepdims=True)                                   # (B, 1)
    diag_sum = jnp.sum(diag_rows, axis=0, keepdims=True)                 # (1, 1)

    lse_row_sum = jnp.sum(lse_rows, axis=0, keepdims=True)               # (1, 1)
    lse_col_sum = jnp.sum(lse_cols, axis=1, keepdims=True)               # (1, 1)

    # 0.5 * ( (sum lse_rows - diag)/B + (sum lse_cols - diag)/B )
    out_ref[...] = (lse_row_sum + lse_col_sum - 2.0 * diag_sum) * (0.5 / B)


def mutual_information_maximizer(image_features, text_features, params,
                                 temperature=0.07):
    """params: dict with w1,b1 (first Linear) and w2,b2 (second Linear).
    w* are PyTorch-layout (out, in); transposed to (in, out) here (glue).

    1/temperature is folded into the shared second Linear: scaling w2 AND b2 by
    temperature**-0.5 scales both f_i and f_t by t^-0.5, so sim = f_i @ f_t^T
    picks up exactly 1/temperature (exact — no nonlinearity after Linear2)."""
    dtype = image_features.dtype
    inv_sqrt_t = float(temperature) ** -0.5

    w1_t = params["w1"].T.astype(dtype)
    w2_t = (params["w2"].T * inv_sqrt_t).astype(dtype)
    b1 = params["b1"].reshape(1, -1).astype(jnp.float32)
    b2 = (params["b2"] * inv_sqrt_t).reshape(1, -1).astype(jnp.float32)

    # Stack image & text so the shared projection runs once over (2B, D).
    feats = jnp.concatenate(
        [image_features, text_features.astype(dtype)], axis=0)
    B = image_features.shape[0]

    kernel = functools.partial(_mim_kernel, batch=B)
    vmem = pl.BlockSpec(memory_space=pltpu.MemorySpace.VMEM)
    loss = pl.pallas_call(
        kernel,
        out_shape=jax.ShapeDtypeStruct((1, 1), jnp.float32),
        in_specs=[vmem] * 5,
        out_specs=vmem,
        compiler_params=pltpu.CompilerParams(
            vmem_limit_bytes=64 * 1024 * 1024),
    )(feats, w1_t, b1, w2_t, b2)
    return loss[0, 0]


def _reference(image_features, text_features, params, temperature=0.07):
    def proj(x):
        h = jnp.maximum(x @ params["w1"].T + params["b1"], 0.0)
        return h @ params["w2"].T + params["b2"]

    f_i = proj(image_features)
    f_t = proj(text_features)
    sim = (f_i @ f_t.T) / temperature
    labels = jnp.arange(sim.shape[0])

    def ce(logits):
        lse = jax.nn.logsumexp(logits, axis=-1)
        tgt = logits[jnp.arange(logits.shape[0]), labels]
        return jnp.mean(lse - tgt)

    return 0.5 * (ce(sim) + ce(sim.T))


if __name__ == "__main__":
    B, D = 8, 32
    key = jax.random.PRNGKey(0)
    k_img, k_txt, k_w1, k_b1, k_w2, k_b2 = jax.random.split(key, 6)

    image_features = jax.random.normal(k_img, (B, D), dtype=jnp.float32)
    text_features = jax.random.normal(k_txt, (B, D), dtype=jnp.float32)

    # Deterministic param init (PyTorch-style uniform(-1/sqrt(D), 1/sqrt(D))).
    bound = 1.0 / (D ** 0.5)
    params = {
        "w1": jax.random.uniform(k_w1, (D, D), jnp.float32, -bound, bound),
        "b1": jax.random.uniform(k_b1, (D,), jnp.float32, -bound, bound),
        "w2": jax.random.uniform(k_w2, (D, D), jnp.float32, -bound, bound),
        "b2": jax.random.uniform(k_b2, (D,), jnp.float32, -bound, bound),
    }

    loss = mutual_information_maximizer(image_features, text_features, params,
                                        temperature=0.07)
    loss = jax.block_until_ready(loss)

    ref = _reference(image_features, text_features, params, temperature=0.07)
    assert jnp.allclose(loss, ref, atol=1e-4, rtol=1e-4), (loss, ref)

    print("KERNEL_OK")
</pallas_src>

<mosaic_0001>
module attributes {stable_mosaic.version = 11 : i64} {
  func.func @_mim_kernel(%arg0: memref<16x32xf32, #tpu.memory_space<vmem>>, %arg1: memref<32x32xf32, #tpu.memory_space<vmem>>, %arg2: memref<1x32xf32, #tpu.memory_space<vmem>>, %arg3: memref<32x32xf32, #tpu.memory_space<vmem>>, %arg4: memref<1x32xf32, #tpu.memory_space<vmem>>, %arg5: memref<1x1xf32, #tpu.memory_space<vmem>>) attributes {dimension_semantics = [], scalar_prefetch = 0 : i64, scratch_operands = 0 : i64, tpu.core_type = #tpu.core_type<tc>} {
    %c0 = arith.constant 0 : index
    %c0_0 = arith.constant 0 : index
    %0 = vector.load %arg0[%c0, %c0_0] : memref<16x32xf32, #tpu.memory_space<vmem>>, vector<16x32xf32>
    %c0_1 = arith.constant 0 : index
    %c0_2 = arith.constant 0 : index
    %1 = vector.load %arg1[%c0_1, %c0_2] : memref<32x32xf32, #tpu.memory_space<vmem>>, vector<32x32xf32>
    %c0_3 = arith.constant 0 : index
    %c0_4 = arith.constant 0 : index
    %2 = vector.load %arg3[%c0_3, %c0_4] : memref<32x32xf32, #tpu.memory_space<vmem>>, vector<32x32xf32>
    %c0_5 = arith.constant 0 : index
    %c0_6 = arith.constant 0 : index
    %3 = vector.load %arg2[%c0_5, %c0_6] : memref<1x32xf32, #tpu.memory_space<vmem>>, vector<1x32xf32>
    %c0_7 = arith.constant 0 : index
    %c0_8 = arith.constant 0 : index
    %4 = vector.load %arg4[%c0_7, %c0_8] : memref<1x32xf32, #tpu.memory_space<vmem>>, vector<1x32xf32>
    %cst = arith.constant dense<0.000000e+00> : vector<16x32xf32>
    %5 = tpu.matmul %0, %1, %cst {dimension_numbers = #tpu.dot_dimension_numbers<[1], [0], [0], [1], [0, 0, 1, 1], [], []>} : vector<16x32xf32>, vector<32x32xf32>, vector<16x32xf32> -> vector<16x32xf32>
    %6 = vector.broadcast %3 : vector<1x32xf32> to vector<16x32xf32>
    %7 = arith.addf %5, %6 : vector<16x32xf32>
    %cst_9 = arith.constant 0.000000e+00 : f32
    %8 = vector.broadcast %cst_9 : f32 to vector<16x32xf32>
    %9 = arith.maximumf %7, %8 : vector<16x32xf32>
    %cst_10 = arith.constant dense<0.000000e+00> : vector<16x32xf32>
    %10 = tpu.matmul %9, %2, %cst_10 {dimension_numbers = #tpu.dot_dimension_numbers<[1], [0], [0], [1], [0, 0, 1, 1], [], []>} : vector<16x32xf32>, vector<32x32xf32>, vector<16x32xf32> -> vector<16x32xf32>
    %11 = vector.broadcast %4 : vector<1x32xf32> to vector<16x32xf32>
    %12 = arith.addf %10, %11 : vector<16x32xf32>
    %13 = vector.extract_strided_slice %12 {offsets = [0, 0], sizes = [8, 32], strides = [1, 1]} : vector<16x32xf32> to vector<8x32xf32>
    %14 = vector.extract_strided_slice %12 {offsets = [8, 0], sizes = [8, 32], strides = [1, 1]} : vector<16x32xf32> to vector<8x32xf32>
    %cst_11 = arith.constant dense<0.000000e+00> : vector<8x8xf32>
    %15 = tpu.matmul %13, %14, %cst_11 {dimension_numbers = #tpu.dot_dimension_numbers<[1], [1], [0], [0], [0, 0, 1, 0], [], []>} : vector<8x32xf32>, vector<8x32xf32>, vector<8x8xf32> -> vector<8x8xf32>
    %16 = tpu.iota {dimensions = array<i32: 0>} : vector<8x8xi32>
    %17 = tpu.iota {dimensions = array<i32: 1>} : vector<8x8xi32>
    %18 = arith.cmpi eq, %16, %17 : vector<8x8xi32>
    %cst_12 = arith.constant dense<0xFF800000> : vector<8xf32>
    %19 = vector.multi_reduction <maximumf>, %15, %cst_12 [1] : vector<8x8xf32> to vector<8xf32>
    %20 = vector.shape_cast %19 : vector<8xf32> to vector<8x1xf32>
    %21 = vector.broadcast %20 : vector<8x1xf32> to vector<8x8xf32>
    %22 = arith.subf %15, %21 : vector<8x8xf32>
    %23 = math.exp %22 : vector<8x8xf32>
    %cst_13 = arith.constant dense<0.000000e+00> : vector<8xf32>
    %24 = vector.multi_reduction <add>, %23, %cst_13 [1] : vector<8x8xf32> to vector<8xf32>
    %25 = vector.shape_cast %24 : vector<8xf32> to vector<8x1xf32>
    %26 = math.log %25 : vector<8x1xf32>
    %27 = arith.addf %26, %20 : vector<8x1xf32>
    %cst_14 = arith.constant dense<0xFF800000> : vector<8xf32>
    %28 = vector.multi_reduction <maximumf>, %15, %cst_14 [0] : vector<8x8xf32> to vector<8xf32>
    %29 = vector.shape_cast %28 : vector<8xf32> to vector<1x8xf32>
    %30 = vector.broadcast %29 : vector<1x8xf32> to vector<8x8xf32>
    %31 = arith.subf %15, %30 : vector<8x8xf32>
    %32 = math.exp %31 : vector<8x8xf32>
    %cst_15 = arith.constant dense<0.000000e+00> : vector<8xf32>
    %33 = vector.multi_reduction <add>, %32, %cst_15 [0] : vector<8x8xf32> to vector<8xf32>
    %34 = vector.shape_cast %33 : vector<8xf32> to vector<1x8xf32>
    %35 = math.log %34 : vector<1x8xf32>
    %36 = arith.addf %35, %29 : vector<1x8xf32>
    %cst_16 = arith.constant 0.000000e+00 : f32
    %37 = vector.broadcast %cst_16 : f32 to vector<8x8xf32>
    %38 = arith.select %18, %15, %37 : vector<8x8xi1>, vector<8x8xf32>
    %cst_17 = arith.constant dense<0.000000e+00> : vector<8xf32>
    %39 = vector.multi_reduction <add>, %38, %cst_17 [1] : vector<8x8xf32> to vector<8xf32>
    %40 = vector.shape_cast %39 : vector<8xf32> to vector<8x1xf32>
    %cst_18 = arith.constant dense<0.000000e+00> : vector<1xf32>
    %41 = vector.multi_reduction <add>, %40, %cst_18 [0] : vector<8x1xf32> to vector<1xf32>
    %42 = vector.shape_cast %41 : vector<1xf32> to vector<1x1xf32>
    %cst_19 = arith.constant dense<0.000000e+00> : vector<1xf32>
    %43 = vector.multi_reduction <add>, %27, %cst_19 [0] : vector<8x1xf32> to vector<1xf32>
    %44 = vector.shape_cast %43 : vector<1xf32> to vector<1x1xf32>
    %cst_20 = arith.constant dense<0.000000e+00> : vector<1xf32>
    %45 = vector.multi_reduction <add>, %36, %cst_20 [1] : vector<1x8xf32> to vector<1xf32>
    %46 = vector.shape_cast %45 : vector<1xf32> to vector<1x1xf32>
    %47 = arith.addf %44, %46 : vector<1x1xf32>
    %cst_21 = arith.constant 2.000000e+00 : f32
    %48 = vector.broadcast %cst_21 : f32 to vector<1x1xf32>
    %49 = arith.mulf %48, %42 : vector<1x1xf32>
    %50 = arith.subf %47, %49 : vector<1x1xf32>
    %cst_22 = arith.constant 6.250000e-02 : f32
    %51 = vector.broadcast %cst_22 : f32 to vector<1x1xf32>
    %52 = arith.mulf %50, %51 : vector<1x1xf32>
    %c0_23 = arith.constant 0 : index
    %c0_24 = arith.constant 0 : index
    %53 = vector.load %arg5[%c0_23, %c0_24] : memref<1x1xf32, #tpu.memory_space<vmem>>, vector<1x1xf32>
    tpu.vector_store %arg5[%c0_23, %c0_24], %52 {strides = array<i32>} : memref<1x1xf32, #tpu.memory_space<vmem>>, vector<1x1xf32>,
    return
  }
}

</mosaic_0001>

<llo_original>
// kernel: tpu_custom_call.1
$region0: #{tpu_custom_call.1}
  #allocation0 [shape = 'u32[]', space=smem, size = 0x4, offset = 0x4, fixed_abs, tag = 'smem constant byte address 0x4 - core index']
  #allocation1 [shape = 'u32[72,128]{1,0:T(1,128)}', space=vmem, size = 0x9000, scoped, tag = 'internal scratch']
  %s0 = inlined_call_operand.hbm [shape: f32[16,32], index: 0, kind: input, shape index: {}]
  %s1 = inlined_call_operand.hbm [shape: f32[32,32], index: 1, kind: input, shape index: {}]
  %s2 = inlined_call_operand.vmem [shape: f32[1,32], index: 2, kind: input, shape index: {}]
  %s3 = inlined_call_operand.hbm [shape: f32[32,32], index: 3, kind: input, shape index: {}]
  %s4 = inlined_call_operand.vmem [shape: f32[1,32], index: 4, kind: input, shape index: {}]
  %s5 = inlined_call_operand.hbm [shape: f32[1,1], index: 5, kind: output, shape index: {}]
  %s6 = sld [smem:[#allocation0]]
  $region42: #{tpu_custom_call.1} parent=0
    _
  %s8 = ssub.s32 1, %s6
  %s9 = scalar_select 0, %s8, %s6
  $region1: #{tpu_custom_call.1} parent=0
    #allocation2 [shape = 'u8[8192]{0}', space=vmem, size = 0x2000, scoped, tag = 'input window, operand 0, single buffered']
    #allocation3 [shape = 's32[1]{0}', space=sflag, size = 0x4, scoped, tag = 'scoped memory for tpu_custom_call.1']
    #allocation4 [shape = 's32[1]{0}', space=sflag, size = 0x4, scoped, tag = 'scoped memory for tpu_custom_call.1']
    #allocation5 [shape = 'u8[16384]{0}', space=vmem, size = 0x4000, scoped, tag = 'input window, operand 1, single buffered']
    #allocation6 [shape = 's32[1]{0}', space=sflag, size = 0x4, scoped, tag = 'scoped memory for tpu_custom_call.1']
    #allocation7 [shape = 'u8[16384]{0}', space=vmem, size = 0x4000, scoped, tag = 'input window, operand 3, single buffered']
    #allocation8 [shape = 'u8[512]{0}', space=vmem, size = 0x400, scoped, tag = 'output window, operand 0, single buffered']
    %10 = vsyncpa [#allocation3], 0
    %11 = vsyncpa [#allocation6], 0
    %12 = vsyncpa [#allocation4], 0
    // Predicated region
    $region2: #{tpu_custom_call.1} parent=1 // pred_check
      _
    $region3: #{tpu_custom_call.1} parent=1 // pred_check_branch
      %14 = sbr.rel (0) target = $region5
    $region4: #{tpu_custom_call.1} parent=1 // pred_region
      %16 = vsyncadd [#allocation3], 0
      %s17 = sshll.u32 %s0, 4
      %s18 = int_to_ptr.hbm [resolvable:$true] %s17
      %s19 = sshll.u32 [#allocation2], 4
      %s20 = int_to_ptr.vmem [resolvable:$true] %s19
      %25 = dma.hbm_to_vmem [thread:$0]  %s18, 256, %s20, [#allocation3], 128, 128, 8
    $region5: #{tpu_custom_call.1} parent=1 // pred_fallthru
      _
    // Predicated region
    $region6: #{tpu_custom_call.1} parent=1 // pred_check
      _
    $region7: #{tpu_custom_call.1} parent=1 // pred_check_branch
      %27 = sbr.rel (0) target = $region9
    $region8: #{tpu_custom_call.1} parent=1 // pred_region
      %29 = vsyncadd [#allocation6], 0
      %s30 = sshll.u32 %s1, 4
      %s31 = int_to_ptr.hbm [resolvable:$true] %s30
      %s32 = sshll.u32 [#allocation5], 4
      %s33 = int_to_ptr.vmem [resolvable:$true] %s32
      %38 = dma.hbm_to_vmem [thread:$0]  %s31, 512, %s33, [#allocation6], 128, 128, 8
    $region9: #{tpu_custom_call.1} parent=1 // pred_fallthru
      _
    // Predicated region
    $region10: #{tpu_custom_call.1} parent=1 // pred_check
      _
    $region11: #{tpu_custom_call.1} parent=1 // pred_check_branch
      %40 = sbr.rel (0) target = $region13
    $region12: #{tpu_custom_call.1} parent=1 // pred_region
      _
    $region13: #{tpu_custom_call.1} parent=1 // pred_fallthru
      _
    // Predicated region
    $region14: #{tpu_custom_call.1} parent=1 // pred_check
      _
    $region15: #{tpu_custom_call.1} parent=1 // pred_check_branch
      %42 = sbr.rel (0) target = $region17
    $region16: #{tpu_custom_call.1} parent=1 // pred_region
      %44 = vsyncadd [#allocation6], 0
      %s45 = sshll.u32 %s3, 4
      %s46 = int_to_ptr.hbm [resolvable:$true] %s45
      %s47 = sshll.u32 [#allocation7], 4
      %s48 = int_to_ptr.vmem [resolvable:$true] %s47
      %53 = dma.hbm_to_vmem [thread:$0]  %s46, 512, %s48, [#allocation6], 128, 128, 8
    $region17: #{tpu_custom_call.1} parent=1 // pred_fallthru
      _
    // Predicated region
    $region18: #{tpu_custom_call.1} parent=1 // pred_check
      _
    $region19: #{tpu_custom_call.1} parent=1 // pred_check_branch
      %55 = sbr.rel (0) target = $region21
    $region20: #{tpu_custom_call.1} parent=1 // pred_region
      _
    $region21: #{tpu_custom_call.1} parent=1 // pred_fallthru
      _
    // Predicated region
    $region22: #{tpu_custom_call.1} parent=1 // pred_check
      _
    $region23: #{tpu_custom_call.1} parent=1 // pred_check_branch
      %57 = sbr.rel (0) target = $region25
    $region24: #{tpu_custom_call.1} parent=1 // pred_region
      %59 = dma.done [#allocation3], 256
    $region25: #{tpu_custom_call.1} parent=1 // pred_fallthru
      _
    // Predicated region
    $region26: #{tpu_custom_call.1} parent=1 // pred_check
      _
    $region27: #{tpu_custom_call.1} parent=1 // pred_check_branch
      %61 = sbr.rel (0) target = $region29
    $region28: #{tpu_custom_call.1} parent=1 // pred_region
      %63 = dma.done [#allocation6], 512
    $region29: #{tpu_custom_call.1} parent=1 // pred_fallthru
      _
    // Predicated region
    $region30: #{tpu_custom_call.1} parent=1 // pred_check
      _
    $region31: #{tpu_custom_call.1} parent=1 // pred_check_branch
      %65 = sbr.rel (0) target = $region33
    $region32: #{tpu_custom_call.1} parent=1 // pred_region
      %67 = dma.done [#allocation6], 512
    $region33: #{tpu_custom_call.1} parent=1 // pred_fallthru
      _
    %v68 = vld [vmem:[#allocation2] sm:$0xff]
    %v69 = vld [vmem:[#allocation2 + $0x8] sm:$0xff]
    %v70 = vld [vmem:[#allocation5] sm:$0xff]
    %v71 = vld [vmem:[#allocation5 + $0x8] sm:$0xff]
    %v72 = vld [vmem:[#allocation5 + $0x10] sm:$0xff]
    %v73 = vld [vmem:[#allocation5 + $0x18] sm:$0xff]
    %v74 = vld [vmem:[#allocation7] sm:$0xff]
    %v75 = vld [vmem:[#allocation7 + $0x8] sm:$0xff]
    %v76 = vld [vmem:[#allocation7 + $0x10] sm:$0xff]
    %v77 = vld [vmem:[#allocation7 + $0x18] sm:$0xff]
    %v78 = vld [vmem:[%s2] sm:$0x1]
    %v79 = vld [vmem:[%s4] sm:$0x1]
    %v81 = vperm.slane %v78, 0
    %vm83 = vcmask 261120
    %v85 = vsel %vm83, %v68, 0
    %v88 = vsel %vm83, %v69, 0
    %90 = vmatpush.msra.mxu0 0.0
    %91 = vmatpush.msra.mxu0 0.0
    %92 = vmatpush.msra.mxu0 0.0
    %93 = vmatpush.msra.mxu0 0.0
    %94 = vmatpush.msra.mxu0 0.0
    %95 = vmatpush.msra.mxu0 0.0
    %96 = vmatpush.msra.mxu0 0.0
    %97 = vmatpush.msra.mxu0 0.0
    %98 = vmatpush.msra.mxu0 0.0
    %99 = vmatpush.msra.mxu0 0.0
    %100 = vmatpush.msra.mxu0 0.0
    %101 = vmatpush.msra.mxu0 0.0
    %102 = vmatpush.msra.mxu0 %v73
    %103 = vmatpush.msra.mxu0 %v72
    %104 = vmatpush.msra.mxu0 %v71
    %105 = vmatpush.msra.mxu0 %v70
    %106 = vmatmul.f32.gmra.mxu0 %v85
    %v107 = vpop.f32.mrf.mxu0
    %v108 = vadd.f32 %v81, %v107
    %109 = vmatmul.f32.gmra.mxu0 %v88
    %v110 = vpop.f32.mrf.mxu0
    %v111 = vadd.f32 %v81, %v110
    %112 = vdwg.mxu0
    %v113 = vmax.f32 %v108, 0.0
    %v114 = vmax.f32 %v111, 0.0
    %v116 = vperm.slane %v79, 0
    %v119 = vsel %vm83, %v113, 0
    %v122 = vsel %vm83, %v114, 0
    %124 = vmatpush.msra.mxu0 0.0
    %125 = vmatpush.msra.mxu0 0.0
    %126 = vmatpush.msra.mxu0 0.0
    %127 = vmatpush.msra.mxu0 0.0
    %128 = vmatpush.msra.mxu0 0.0
    %129 = vmatpush.msra.mxu0 0.0
    %130 = vmatpush.msra.mxu0 0.0
    %131 = vmatpush.msra.mxu0 0.0
    %132 = vmatpush.msra.mxu0 0.0
    %133 = vmatpush.msra.mxu0 0.0
    %134 = vmatpush.msra.mxu0 0.0
    %135 = vmatpush.msra.mxu0 0.0
    %136 = vmatpush.msra.mxu0 %v77
    %137 = vmatpush.msra.mxu0 %v76
    %138 = vmatpush.msra.mxu0 %v75
    %139 = vmatpush.msra.mxu0 %v74
    %140 = vmatmul.f32.gmra.mxu0 %v119
    %v141 = vpop.f32.mrf.mxu0
    %v142 = vadd.f32 %v116, %v141
    %143 = vmatmul.f32.gmra.mxu0 %v122
    %v144 = vpop.f32.mrf.mxu0
    %v145 = vadd.f32 %v116, %v144
    %146 = vdwg.mxu0
    %v148 = vsel %vm83, %v142, 0
    %v151 = vsel %vm83, %v145, 0
    %153 = vmatpush.xpose.msra.mxu0 0.0
    %154 = vmatpush.xpose.msra.mxu0 0.0
    %155 = vmatpush.xpose.msra.mxu0 0.0
    %156 = vmatpush.xpose.msra.mxu0 0.0
    %157 = vmatpush.xpose.msra.mxu0 0.0
    %158 = vmatpush.xpose.msra.mxu0 0.0
    %159 = vmatpush.xpose.msra.mxu0 0.0
    %160 = vmatpush.xpose.msra.mxu0 0.0
    %161 = vmatpush.xpose.msra.mxu0 0.0
    %162 = vmatpush.xpose.msra.mxu0 0.0
    %163 = vmatpush.xpose.msra.mxu0 0.0
    %164 = vmatpush.xpose.msra.mxu0 0.0
    %165 = vmatpush.xpose.msra.mxu0 0.0
    %166 = vmatpush.xpose.msra.mxu0 0.0
    %167 = vmatpush.xpose.msra.mxu0 0.0
    %168 = vmatpush.xpose.msra.mxu0 %v151
    %169 = vmatmul.f32.gmra.mxu0 %v148
    %v170 = vpop.f32.mrf.mxu0
    %v171 = vadd.f32 0.0, %v170
    %172 = vdwg.mxu0
    %v173 = vlaneseq
    %v174 = vshrl.u32 %v173, 7
    %v175 = vlaneseq
    %v176 = vand.u32 %v175, 127
    %vm177 = vcmp.eq.s32.totalorder %v174, %v176
    %vm178 = vcmask 64512
    %v179 = vsel %vm178, %v171, -inf
    %180 = vmax.xlane.f32.xlu0 %v179
    %v181 = vpop.xlane.xlu0 %180
    %v182 = vsub.f32 %v171, %v181
    %v183 = vmul.f32 %v182, 1.442695
    %v184 = vpow.pop %v183
    %v185 = vsel %vm178, %v184, 0.0
    %186 = vadd.xlane.f32.xlu0 %v185
    %v187 = vpop.xlane.xlu0 %186
    %v188 = vlog2.pop %v187
    %v189 = vmul.f32 %v188, 0.6931472
    %v190 = vadd.f32 %v189, %v181
    %v191 = vrot.slane %v179, 4
    %v192 = vmax.f32 %v179, %v191
    %v193 = vrot.slane %v192, 2
    %v194 = vmax.f32 %v192, %v193
    %v195 = vrot.slane %v194, 1
    %v196 = vmax.f32 %v194, %v195
    %v197 = vsub.f32 %v171, %v196
    %v198 = vmul.f32 %v197, 1.442695
    %v199 = vpow.pop %v198
    %v200 = vsel %vm178, %v199, 0.0
    %v201 = vrot.slane %v200, 4
    %v202 = vadd.f32 %v200, %v201
    %v203 = vrot.slane %v202, 2
    %v204 = vadd.f32 %v202, %v203
    %v205 = vrot.slane %v204, 1
    %v206 = vadd.f32 %v204, %v205
    %v207 = vlog2.pop %v206
    %v208 = vmul.f32 %v207, 0.6931472
    %v209 = vadd.f32 %v208, %v196
    %v210 = vsel %vm177, %v171, 0.0
    %v211 = vsel %vm178, %v210, 0.0
    %212 = vadd.xlane.f32.xlu0 %v211
    %v213 = vpop.xlane.xlu0 %212
    %v214 = vrot.slane %v213, 4
    %v215 = vadd.f32 %v213, %v214
    %v216 = vrot.slane %v215, 2
    %v217 = vadd.f32 %v215, %v216
    %v218 = vrot.slane %v217, 1
    %v219 = vadd.f32 %v217, %v218
    %v220 = vrot.slane %v190, 4
    %v221 = vadd.f32 %v190, %v220
    %v222 = vrot.slane %v221, 2
    %v223 = vadd.f32 %v221, %v222
    %v224 = vrot.slane %v223, 1
    %v225 = vadd.f32 %v223, %v224
    %v226 = vsel %vm178, %v209, 0.0
    %227 = vadd.xlane.f32.xlu0 %v226
    %v228 = vpop.xlane.xlu0 %227
    %v229 = vadd.f32 %v225, %v228
    %v230 = vmul.f32 %v219, 2.0
    %v231 = vsub.f32 %v229, %v230
    %v232 = vmul.f32 %v231, 0.0625
    %vm233 = vcmask 0
    %234 = vst.msk [vmem:[#allocation8] sm:$0x1] %vm233, %v232
    // Predicated region
    $region34: #{tpu_custom_call.1} parent=1 // pred_check
      _
    $region35: #{tpu_custom_call.1} parent=1 // pred_check_branch
      %236 = sbr.rel (0) target = $region37
    $region36: #{tpu_custom_call.1} parent=1 // pred_region
      %238 = vsyncadd [#allocation4], 0
      %s240 = sshll.u32 [#allocation8], 4
      %s241 = int_to_ptr.vmem [resolvable:$true] %s240
      %s242 = sshll.u32 %s5, 4
      %s243 = int_to_ptr.hbm [resolvable:$true] %s242
      %245 = dma.vmem_to_hbm [thread:$0]  %s241, 16, %s243, [#allocation4]
    $region37: #{tpu_custom_call.1} parent=1 // pred_fallthru
      _
    // Predicated region
    $region38: #{tpu_custom_call.1} parent=1 // pred_check
      _
    $region39: #{tpu_custom_call.1} parent=1 // pred_check_branch
      %247 = sbr.rel (0) target = $region41
    $region40: #{tpu_custom_call.1} parent=1 // pred_region
      %249 = dma.done [#allocation4], 16
    $region41: #{tpu_custom_call.1} parent=1 // pred_fallthru
      _
    %250 = vsyncpa [#allocation3], 1
    %251 = vsyncpa [#allocation6], 1
    %252 = vsyncpa [#allocation4], 1

</llo_original>
